<compile_context>
chip_gen: v7x
topology: tpu7x:2x2x1
jax: 0.10.0
libtpu: 0.0.40
codegen_flags: <defaults>
</compile_context>

<pallas_src>
import math

import jax
import jax.numpy as jnp
from jax.experimental import pallas as pl
from jax.experimental.pallas import tpu as pltpu

_TARGET_BLOCK_BYTES = 4 * 1024 * 1024   # ~4 MiB blocks (>=85-90% of HBM roofline)
_VMEM_LIMIT_BYTES = 32 * 1024 * 1024    # safe on v5e/v6e (128 MiB) and v7x (64 MiB/TC)


def _ncp_copy_kernel(x_ref, o_ref):
    # NCP forward: the native state is unchanged after integrating over dt.
    o_ref[...] = x_ref[...]


def _sublane_pack(dtype):
    """Rows-per-sublane-tile for this dtype (8 f32, 16 bf16, 32 int8)."""
    itemsize = jnp.dtype(dtype).itemsize
    return 8 * max(1, 4 // itemsize)


def _ncp_identity_pallas(x):
    """Identity pass over x via a lane-dense, row-tiled Pallas copy."""
    x = jnp.asarray(x)
    if x.size == 0:
        return x

    orig_shape = x.shape
    if x.ndim < 2:
        x2 = x.reshape(1, -1)
    else:
        x2 = x.reshape(math.prod(orig_shape[:-1]), orig_shape[-1])

    rows, cols = x2.shape
    itemsize = jnp.dtype(x2.dtype).itemsize
    pack = _sublane_pack(x2.dtype)
    bytes_per_row = max(1, cols * itemsize)

    # Largest row-tile (multiple of the sublane packing) under the block budget.
    rows_per_block = max(pack, (_TARGET_BLOCK_BYTES // bytes_per_row) // pack * pack)
    if rows <= rows_per_block:
        tile_rows = rows            # single full-array block (exempt from 8-row rule)
    else:
        tile_rows = rows_per_block  # multiple of `pack`; edge block handled by Pallas
    grid = (pl.cdiv(rows, tile_rows),)

    # Alias input -> output only when x2 is a fresh intermediate (reshape made a
    # new buffer).  Never donate the caller's own array: forward() must leave x
    # valid, exactly like the PyTorch module.
    aliases = {} if x2 is x else {0: 0}

    out = pl.pallas_call(
        _ncp_copy_kernel,
        out_shape=jax.ShapeDtypeStruct((rows, cols), x2.dtype),
        grid=grid,
        in_specs=[pl.BlockSpec((tile_rows, cols), lambda i: (i, 0))],
        out_specs=pl.BlockSpec((tile_rows, cols), lambda i: (i, 0)),
        input_output_aliases=aliases,
        compiler_params=pltpu.CompilerParams(
            dimension_semantics=("parallel",),   # megacore shards the row-tile axis
            vmem_limit_bytes=_VMEM_LIMIT_BYTES,
        ),
    )(x2)

    return out.reshape(orig_shape)


class NcpPallas:
    """JAX/Pallas port of pyro.contrib.tracking.dynamic_models.Ncp."""

    def __init__(self, dimension, sv2):
        self._dimension = dimension
        self._dimension_pv = 2 * dimension
        self._num_process_noise_parameters = 1
        # Parameter sv2 (scalar) — not used by forward().
        self.sv2 = jnp.asarray(sv2, dtype=jnp.float32)
        # Cached state-transition Jacobian F = I (identity), as in PyTorch.
        self._F_cache = jnp.eye(dimension, dtype=jnp.float32)

    @property
    def dimension(self):
        return self._dimension

    @property
    def dimension_pv(self):
        return self._dimension_pv

    @property
    def num_process_noise_parameters(self):
        return self._num_process_noise_parameters

    def forward(self, x, dt, do_normalization=True):
        """Integrate native state x over dt (NCP: identity), via the Pallas copy.

        Note: the optimal production path is simply `return jnp.asarray(x)`
        (the map is the identity); the Pallas kernel is retained to exercise an
        explicit TPU kernel for this forward pass.
        """
        del dt, do_normalization  # no effect for this subclass
        return _ncp_identity_pallas(x)

    def geodesic_difference(self, x1, x0):
        return x1 - x0

    def jacobian(self, dt):
        return self._F_cache

    def mean2pv(self, x):
        # PV state: [position; zero velocity]  (glue, plain JAX)
        x_pv = jnp.zeros((2 * self._dimension,), dtype=x.dtype)
        return x_pv.at[: self._dimension].set(x)

    def cov2pv(self, P):
        d = 2 * self._dimension
        P_pv = jnp.zeros((d, d), dtype=P.dtype)
        return P_pv.at[: self._dimension, : self._dimension].set(P)

    # TODO(synk): process_noise_cov is abstract in Ncp (defined by CWNV/DWNV
    # subclasses), so it is intentionally not implemented here.


if __name__ == "__main__":
    key = jax.random.PRNGKey(0)

    dimension = 32
    batch = 8
    model = NcpPallas(dimension=dimension, sv2=2.0)
    dt = 0.1

    # 2-D state batch (no reshape needed, no aliasing: caller's x stays valid).
    x = jax.random.normal(key, (batch, dimension), dtype=jnp.float32)
    y = jax.block_until_ready(model.forward(x, dt))
    assert y.shape == x.shape and y.dtype == x.dtype
    assert bool(jnp.all(y == x))

    # 1-D state vector (exercises the reshape + input/output aliasing path).
    x1 = jax.random.normal(jax.random.PRNGKey(1), (dimension,), dtype=jnp.float32)
    y1 = jax.block_until_ready(model.forward(x1, dt))
    assert y1.shape == x1.shape and bool(jnp.all(y1 == x1))

    # Higher-rank batched state.
    x3 = jax.random.normal(jax.random.PRNGKey(2), (2, 4, dimension), dtype=jnp.float32)
    y3 = jax.block_until_ready(model.forward(x3, dt))
    assert y3.shape == x3.shape and bool(jnp.all(y3 == x3))

    # Glue methods (plain JAX, no kernel).
    xp = model.mean2pv(x1)
    assert xp.shape == (2 * dimension,) and bool(jnp.all(xp[:dimension] == x1))
    assert model.jacobian(dt).shape == (dimension, dimension)

    print("KERNEL_OK")
</pallas_src>

<mosaic_0001>
module attributes {stable_mosaic.version = 11 : i64} {
  func.func @_ncp_copy_kernel(%arg0: i32, %arg1: memref<8x32xf32, #tpu.memory_space<vmem>>, %arg2: memref<8x32xf32, #tpu.memory_space<vmem>>) attributes {dimension_semantics = [#tpu.dimension_semantics<parallel>], iteration_bounds = array<i64: 1>, scalar_prefetch = 0 : i64, scratch_operands = 0 : i64, tpu.core_type = #tpu.core_type<tc>, window_params = [{transform_indices = @transform_0, window_bounds = array<i64: 8, 32>}, {transform_indices = @transform_1, window_bounds = array<i64: 8, 32>}]} {
    %c0 = arith.constant 0 : index
    %c0_0 = arith.constant 0 : index
    %0 = vector.load %arg1[%c0, %c0_0] : memref<8x32xf32, #tpu.memory_space<vmem>>, vector<8x32xf32>
    %c0_1 = arith.constant 0 : index
    %c0_2 = arith.constant 0 : index
    %1 = vector.load %arg2[%c0_1, %c0_2] : memref<8x32xf32, #tpu.memory_space<vmem>>, vector<8x32xf32>
    tpu.vector_store %arg2[%c0_1, %c0_2], %0 {strides = array<i32>} : memref<8x32xf32, #tpu.memory_space<vmem>>, vector<8x32xf32>,
    return
  }
  func.func @transform_0(%arg0: i32) -> (i32, i32) {
    %c0_i32 = arith.constant 0 : i32
    %c0_i32_0 = arith.constant 0 : i32
    return %arg0, %c0_i32 : i32, i32
  }
  func.func @transform_1(%arg0: i32) -> (i32, i32) {
    %c0_i32 = arith.constant 0 : i32
    %c0_i32_0 = arith.constant 0 : i32
    return %arg0, %c0_i32 : i32, i32
  }
}

</mosaic_0001>

<llo_original>
// kernel: tpu_custom_call.1
$region0: #{tpu_custom_call.1}
  #allocation0 [shape = 'u32[]', space=smem, size = 0x4, offset = 0x4, fixed_abs, tag = 'smem constant byte address 0x4 - core index']
  #allocation1 [shape = 'u32[144,128]{1,0:T(1,128)}', space=vmem, size = 0x12000, scoped, tag = 'internal scratch']
  %s0 = inlined_call_operand.hbm [shape: f32[8,32], index: 0, kind: input, shape index: {}]
  %s1 = inlined_call_operand.hbm [shape: f32[8,32], index: 1, kind: output, shape index: {}]
  %s2 = sld [smem:[#allocation0]]
  $region18: #{tpu_custom_call.1} parent=0
    _
  %s4 = ssub.s32 1, %s2
  %s5 = scalar_select 0, %s4, %s2
  $region1: #{tpu_custom_call.1} parent=0
    #allocation2 [shape = 'u8[4096]{0}', space=vmem, size = 0x1000, scoped, tag = 'input window, operand 0, single buffered']
    #allocation3 [shape = 's32[1]{0}', space=sflag, size = 0x4, scoped, tag = 'scoped memory for tpu_custom_call.1']
    #allocation4 [shape = 's32[1]{0}', space=sflag, size = 0x4, scoped, tag = 'scoped memory for tpu_custom_call.1']
    #allocation5 [shape = 'u8[4096]{0}', space=vmem, size = 0x1000, scoped, tag = 'output window, operand 0, single buffered']
    %6 = vsyncpa [#allocation3], 0
    %7 = vsyncpa [#allocation4], 0
    // Predicated region
    $region2: #{tpu_custom_call.1} parent=1 // pred_check
      _
    $region3: #{tpu_custom_call.1} parent=1 // pred_check_branch
      %9 = sbr.rel (0) target = $region5
    $region4: #{tpu_custom_call.1} parent=1 // pred_region
      %s11 = ssub.s32 128, 128
      %12 = vsyncadd [#allocation3], %s11
      %s14 = sshll.u32 [#allocation2], 4
      %s15 = int_to_ptr.vmem [resolvable:$true] %s14
      %17 = dma.hbm_to_vmem [thread:$0]  %s0, 128, %s15, [#allocation3]
    $region5: #{tpu_custom_call.1} parent=1 // pred_fallthru
      _
    // Predicated region
    $region6: #{tpu_custom_call.1} parent=1 // pred_check
      _
    $region7: #{tpu_custom_call.1} parent=1 // pred_check_branch
      %19 = sbr.rel (0) target = $region9
    $region8: #{tpu_custom_call.1} parent=1 // pred_region
      %20 = dma.done [#allocation3], 128
    $region9: #{tpu_custom_call.1} parent=1 // pred_fallthru
      _
    %v21 = vld [vmem:[#allocation2] sm:$0xff]
    %vm22 = vcmask 261120
    %23 = vst.msk [vmem:[#allocation5] sm:$0xff] %vm22, %v21
    // Predicated region
    $region10: #{tpu_custom_call.1} parent=1 // pred_check
      _
    $region11: #{tpu_custom_call.1} parent=1 // pred_check_branch
      %25 = sbr.rel (0) target = $region13
    $region12: #{tpu_custom_call.1} parent=1 // pred_region
      %s27 = ssub.s32 128, 128
      %28 = vsyncadd [#allocation4], %s27
      %s30 = sshll.u32 [#allocation5], 4
      %s31 = int_to_ptr.vmem [resolvable:$true] %s30
      %33 = dma.vmem_to_hbm [thread:$0]  %s31, 128, %s1, [#allocation4]
    $region13: #{tpu_custom_call.1} parent=1 // pred_fallthru
      _
    // Predicated region
    $region14: #{tpu_custom_call.1} parent=1 // pred_check
      _
    $region15: #{tpu_custom_call.1} parent=1 // pred_check_branch
      %35 = sbr.rel (0) target = $region17
    $region16: #{tpu_custom_call.1} parent=1 // pred_region
      %36 = dma.done [#allocation4], 128
    $region17: #{tpu_custom_call.1} parent=1 // pred_fallthru
      _
    %37 = vsyncpa [#allocation3], 1
    %38 = vsyncpa [#allocation4], 1

</llo_original>
